<compile_context>
chip_gen: v7x
topology: tpu7x:2x2x1
jax: 0.10.0
libtpu: 0.0.40
codegen_flags: <defaults>
</compile_context>

<pallas_src>
import functools

import jax
import jax.numpy as jnp
from jax.experimental import pallas as pl
from jax.experimental.pallas import tpu as pltpu


def _topic_attn_kernel(out_ref, te_ref, w_in_t_ref, w_oe_t_ref, w_oh_t_ref,
                       b_ref, o_ref):
    TB, L_out, H = out_ref.shape
    _, L_top, E = te_ref.shape
    cdt = out_ref.dtype                     # matmul-operand dtype (f32 or bf16)

    out3 = out_ref[...]                     # (TB, L_out, H)
    te3 = te_ref[...]                       # (TB, L_top, E)

    # linear_in: topics_in = topic_embed @ W_in^T  (TB folded into M, f32 acc)
    topics_in = jnp.dot(te3.reshape(TB * L_top, E), w_in_t_ref[...],
                        preferred_element_type=jnp.float32)      # (TB*L_top, H)
    topics_in3 = topics_in.astype(cdt).reshape(TB, L_top, H)

    # attention scores: contract last dims, no transposes needed
    scores = jnp.einsum('bqh,bkh->bqk', out3, topics_in3,
                        preferred_element_type=jnp.float32)      # (TB,L_out,L_top)

    # NOTE: masked_fill in the reference is a discarded non-inplace op -> no-op.

    # softmax over the topic dimension (f32)
    m = jnp.max(scores, axis=-1, keepdims=True)
    p = jnp.exp(scores - m)
    denom = jnp.sum(p, axis=-1, keepdims=True)
    attn = p * pl.reciprocal(denom, approx=True)

    # context = attn @ topic_embed
    ctx3 = jnp.einsum('bqk,bke->bqe', attn.astype(cdt), te3,
                      preferred_element_type=jnp.float32)        # (TB,L_out,E)

    # linear_out on concat(ctx, output), as a split matmul with TB folded into M
    ctx2 = ctx3.astype(cdt).reshape(TB * L_out, E)
    out2 = out3.reshape(TB * L_out, H)
    pre = (jnp.dot(ctx2, w_oe_t_ref[...], preferred_element_type=jnp.float32)
           + jnp.dot(out2, w_oh_t_ref[...], preferred_element_type=jnp.float32)
           + b_ref[...].astype(jnp.float32))                     # (TB*L_out, H)
    o_ref[...] = jnp.tanh(pre).reshape(TB, L_out, H).astype(o_ref.dtype)


@functools.partial(jax.jit, static_argnames=("block_b", "matmul_dtype"))
def topic_attn(output, topic_embed, topic_mask, w_in, w_out, b_out,
               *, block_b=16, matmul_dtype=jnp.float32):
    """output: (B, L_out, H); topic_embed: (B, L_top, E).
    topic_mask is accepted but unused (exact reference semantics, see header)."""
    del topic_mask  # intentionally a no-op, see header comment
    B, L_out, H = output.shape
    _, L_top, E = topic_embed.shape

    TB = min(B, block_b)
    B_pad = pl.cdiv(B, TB) * TB
    if B_pad != B:                          # pad batch to a multiple of TB
        pad = B_pad - B
        output_p = jnp.pad(output, ((0, pad), (0, 0), (0, 0)))
        te_p = jnp.pad(topic_embed, ((0, pad), (0, 0), (0, 0)))
    else:
        output_p, te_p = output, topic_embed

    # pre-transposed weight views (one-time XLA op; avoids per-step in-kernel .T)
    w_in_t = w_in.T.astype(matmul_dtype)            # (E, H)
    w_oe_t = w_out[:, :E].T.astype(matmul_dtype)    # (E, H)  ctx part
    w_oh_t = w_out[:, E:].T.astype(matmul_dtype)    # (H, H)  dec-hidden part
    b2d = b_out.reshape(1, H).astype(jnp.float32)

    out_a = output_p.astype(matmul_dtype)
    te_a = te_p.astype(matmul_dtype)

    res = pl.pallas_call(
        _topic_attn_kernel,
        out_shape=jax.ShapeDtypeStruct((B_pad, L_out, H), output.dtype),
        grid_spec=pltpu.PrefetchScalarGridSpec(
            num_scalar_prefetch=0,
            grid=(B_pad // TB,),
            in_specs=[
                pl.BlockSpec((TB, L_out, H), lambda b: (b, 0, 0)),
                pl.BlockSpec((TB, L_top, E), lambda b: (b, 0, 0)),
                pl.BlockSpec((E, H), lambda b: (0, 0)),   # loop-invariant weights
                pl.BlockSpec((E, H), lambda b: (0, 0)),
                pl.BlockSpec((H, H), lambda b: (0, 0)),
                pl.BlockSpec((1, H), lambda b: (0, 0)),
            ],
            out_specs=pl.BlockSpec((TB, L_out, H), lambda b: (b, 0, 0)),
        ),
        compiler_params=pltpu.CompilerParams(
            dimension_semantics=("parallel",)),
    )(out_a, te_a, w_in_t, w_oe_t, w_oh_t, b2d)
    return res[:B]


def topic_attn_ref(output, topic_embed, topic_mask, w_in, w_out, b_out):
    # pure-JAX reference of the exact PyTorch forward semantics
    del topic_mask  # no-op in the original forward (result of masked_fill discarded)
    E = topic_embed.shape[-1]
    topics_in = jnp.einsum('bke,he->bkh', topic_embed, w_in)
    scores = jnp.einsum('bqh,bkh->bqk', output, topics_in)
    attn = jax.nn.softmax(scores, axis=2)
    ctx = jnp.einsum('bqk,bke->bqe', attn, topic_embed)
    cat = jnp.concatenate([ctx, output], axis=2)
    return jnp.tanh(jnp.einsum('bqf,hf->bqh', cat, w_out) + b_out)


if __name__ == "__main__":
    B, L_out, L_top = 2, 8, 8
    E, H = 32, 32                       # embed_size, dec_hidden_size

    key = jax.random.PRNGKey(0)
    k1, k2, k3, k4, k5 = jax.random.split(key, 5)

    # deterministic parameter init (PyTorch-style uniform bounds)
    w_in = jax.random.uniform(k1, (H, E), jnp.float32,
                              -1.0 / E ** 0.5, 1.0 / E ** 0.5)
    w_out = jax.random.uniform(k2, (H, E + H), jnp.float32,
                               -1.0 / (E + H) ** 0.5, 1.0 / (E + H) ** 0.5)
    b_out = jax.random.uniform(k3, (H,), jnp.float32,
                               -1.0 / (E + H) ** 0.5, 1.0 / (E + H) ** 0.5)

    output = jax.random.normal(k4, (B, L_out, H), jnp.float32)
    topic_embed = jax.random.normal(k5, (B, L_top, E), jnp.float32)
    topic_mask = jnp.zeros((B, L_out, L_top), dtype=bool)

    y_ref = topic_attn_ref(output, topic_embed, topic_mask, w_in, w_out, b_out)

    # f32 matmul-operand path (tight check; only approx-reciprocal deviation)
    y32 = topic_attn(output, topic_embed, topic_mask, w_in, w_out, b_out,
                     matmul_dtype=jnp.float32)
    jax.block_until_ready(y32)
    assert y32.shape == (B, L_out, H) and y32.dtype == jnp.float32
    assert jnp.allclose(y32, y_ref, atol=5e-3, rtol=5e-3), \
        ("f32 path mismatch", float(jnp.max(jnp.abs(y32 - y_ref))))

    # bf16 matmul-operand path (v6e/v7x fast path, f32 accumulation) — sanity bound
    ybf = topic_attn(output, topic_embed, topic_mask, w_in, w_out, b_out,
                     matmul_dtype=jnp.bfloat16)
    jax.block_until_ready(ybf)
    assert float(jnp.max(jnp.abs(ybf - y_ref))) < 1e-1, \
        ("bf16 path mismatch", float(jnp.max(jnp.abs(ybf - y_ref))))

    print("KERNEL_OK")
</pallas_src>

<mosaic_0001>
module attributes {stable_mosaic.version = 11 : i64} {
  func.func @_topic_attn_kernel(%arg0: i32, %arg1: memref<2x8x32xf32, #tpu.memory_space<vmem>>, %arg2: memref<2x8x32xf32, #tpu.memory_space<vmem>>, %arg3: memref<32x32xf32, #tpu.memory_space<vmem>>, %arg4: memref<32x32xf32, #tpu.memory_space<vmem>>, %arg5: memref<32x32xf32, #tpu.memory_space<vmem>>, %arg6: memref<1x32xf32, #tpu.memory_space<vmem>>, %arg7: memref<2x8x32xf32, #tpu.memory_space<vmem>>) attributes {dimension_semantics = [#tpu.dimension_semantics<parallel>], iteration_bounds = array<i64: 1>, scalar_prefetch = 0 : i64, scratch_operands = 0 : i64, tpu.core_type = #tpu.core_type<tc>, window_params = [{transform_indices = @transform_0, window_bounds = array<i64: 2, 8, 32>}, {transform_indices = @transform_1, window_bounds = array<i64: 2, 8, 32>}, {pipeline_mode = #tpu.pipeline_mode<synchronous>, transform_indices = @transform_2, window_bounds = array<i64: 32, 32>}, {pipeline_mode = #tpu.pipeline_mode<synchronous>, transform_indices = @transform_3, window_bounds = array<i64: 32, 32>}, {pipeline_mode = #tpu.pipeline_mode<synchronous>, transform_indices = @transform_4, window_bounds = array<i64: 32, 32>}, {pipeline_mode = #tpu.pipeline_mode<synchronous>, transform_indices = @transform_5, window_bounds = array<i64: 1, 32>}, {transform_indices = @transform_6, window_bounds = array<i64: 2, 8, 32>}]} {
    %c0 = arith.constant 0 : index
    %c0_0 = arith.constant 0 : index
    %c0_1 = arith.constant 0 : index
    %0 = vector.load %arg1[%c0, %c0_0, %c0_1] : memref<2x8x32xf32, #tpu.memory_space<vmem>>, vector<2x8x32xf32>
    %c0_2 = arith.constant 0 : index
    %c0_3 = arith.constant 0 : index
    %c0_4 = arith.constant 0 : index
    %1 = vector.load %arg2[%c0_2, %c0_3, %c0_4] : memref<2x8x32xf32, #tpu.memory_space<vmem>>, vector<2x8x32xf32>
    %2 = vector.shape_cast %1 : vector<2x8x32xf32> to vector<16x32xf32>
    %c0_5 = arith.constant 0 : index
    %c0_6 = arith.constant 0 : index
    %3 = vector.load %arg3[%c0_5, %c0_6] : memref<32x32xf32, #tpu.memory_space<vmem>>, vector<32x32xf32>
    %cst = arith.constant dense<0.000000e+00> : vector<16x32xf32>
    %4 = tpu.matmul %2, %3, %cst {dimension_numbers = #tpu.dot_dimension_numbers<[1], [0], [0], [1], [0, 0, 1, 1], [], []>} : vector<16x32xf32>, vector<32x32xf32>, vector<16x32xf32> -> vector<16x32xf32>
    %5 = vector.shape_cast %4 : vector<16x32xf32> to vector<2x8x32xf32>
    "tpu.trace_start"() <{level = 10 : i32, message = "bqh,bkh->bqk"}> : () -> ()
    %cst_7 = arith.constant dense<0.000000e+00> : vector<2x8x8xf32>
    %6 = tpu.matmul %0, %5, %cst_7 {dimension_numbers = #tpu.dot_dimension_numbers<[2], [2], [1], [1], [0, 0, 0, 1, 1, 1], [0], [0]>} : vector<2x8x32xf32>, vector<2x8x32xf32>, vector<2x8x8xf32> -> vector<2x8x8xf32>
    "tpu.trace_stop"() : () -> ()
    %cst_8 = arith.constant dense<0xFF800000> : vector<2x8xf32>
    %7 = vector.multi_reduction <maximumf>, %6, %cst_8 [2] : vector<2x8x8xf32> to vector<2x8xf32>
    %8 = vector.shape_cast %7 : vector<2x8xf32> to vector<2x8x1xf32>
    %9 = vector.broadcast %8 : vector<2x8x1xf32> to vector<2x8x8xf32>
    %10 = arith.subf %6, %9 : vector<2x8x8xf32>
    %11 = math.exp %10 : vector<2x8x8xf32>
    %cst_9 = arith.constant dense<0.000000e+00> : vector<2x8xf32>
    %12 = vector.multi_reduction <add>, %11, %cst_9 [2] : vector<2x8x8xf32> to vector<2x8xf32>
    %13 = vector.shape_cast %12 : vector<2x8xf32> to vector<2x8x1xf32>
    %14 = tpu.reciprocal %13 {approx = true} : vector<2x8x1xf32> -> vector<2x8x1xf32>
    %15 = vector.broadcast %14 : vector<2x8x1xf32> to vector<2x8x8xf32>
    %16 = arith.mulf %11, %15 : vector<2x8x8xf32>
    "tpu.trace_start"() <{level = 10 : i32, message = "bqk,bke->bqe"}> : () -> ()
    %cst_10 = arith.constant dense<0.000000e+00> : vector<2x8x32xf32>
    %17 = tpu.matmul %16, %1, %cst_10 {dimension_numbers = #tpu.dot_dimension_numbers<[2], [1], [1], [2], [0, 0, 0, 1, 1, 2], [0], [0]>} : vector<2x8x8xf32>, vector<2x8x32xf32>, vector<2x8x32xf32> -> vector<2x8x32xf32>
    "tpu.trace_stop"() : () -> ()
    %18 = vector.shape_cast %17 : vector<2x8x32xf32> to vector<16x32xf32>
    %19 = vector.shape_cast %0 : vector<2x8x32xf32> to vector<16x32xf32>
    %c0_11 = arith.constant 0 : index
    %c0_12 = arith.constant 0 : index
    %20 = vector.load %arg4[%c0_11, %c0_12] : memref<32x32xf32, #tpu.memory_space<vmem>>, vector<32x32xf32>
    %cst_13 = arith.constant dense<0.000000e+00> : vector<16x32xf32>
    %21 = tpu.matmul %18, %20, %cst_13 {dimension_numbers = #tpu.dot_dimension_numbers<[1], [0], [0], [1], [0, 0, 1, 1], [], []>} : vector<16x32xf32>, vector<32x32xf32>, vector<16x32xf32> -> vector<16x32xf32>
    %c0_14 = arith.constant 0 : index
    %c0_15 = arith.constant 0 : index
    %22 = vector.load %arg5[%c0_14, %c0_15] : memref<32x32xf32, #tpu.memory_space<vmem>>, vector<32x32xf32>
    %cst_16 = arith.constant dense<0.000000e+00> : vector<16x32xf32>
    %23 = tpu.matmul %19, %22, %cst_16 {dimension_numbers = #tpu.dot_dimension_numbers<[1], [0], [0], [1], [0, 0, 1, 1], [], []>} : vector<16x32xf32>, vector<32x32xf32>, vector<16x32xf32> -> vector<16x32xf32>
    %24 = arith.addf %21, %23 : vector<16x32xf32>
    %c0_17 = arith.constant 0 : index
    %c0_18 = arith.constant 0 : index
    %25 = vector.load %arg6[%c0_17, %c0_18] : memref<1x32xf32, #tpu.memory_space<vmem>>, vector<1x32xf32>
    %26 = vector.broadcast %25 : vector<1x32xf32> to vector<16x32xf32>
    %27 = arith.addf %24, %26 : vector<16x32xf32>
    %28 = math.tanh %27 : vector<16x32xf32>
    %29 = vector.shape_cast %28 : vector<16x32xf32> to vector<2x8x32xf32>
    %c0_19 = arith.constant 0 : index
    %c0_20 = arith.constant 0 : index
    %c0_21 = arith.constant 0 : index
    %30 = vector.load %arg7[%c0_19, %c0_20, %c0_21] : memref<2x8x32xf32, #tpu.memory_space<vmem>>, vector<2x8x32xf32>
    tpu.vector_store %arg7[%c0_19, %c0_20, %c0_21], %29 {strides = array<i32>} : memref<2x8x32xf32, #tpu.memory_space<vmem>>, vector<2x8x32xf32>,
    return
  }
  func.func @transform_0(%arg0: i32) -> (i32, i32, i32) {
    %c0_i32 = arith.constant 0 : i32
    %c0_i32_0 = arith.constant 0 : i32
    %c0_i32_1 = arith.constant 0 : i32
    return %arg0, %c0_i32, %c0_i32_0 : i32, i32, i32
  }
  func.func @transform_1(%arg0: i32) -> (i32, i32, i32) {
    %c0_i32 = arith.constant 0 : i32
    %c0_i32_0 = arith.constant 0 : i32
    %c0_i32_1 = arith.constant 0 : i32
    return %arg0, %c0_i32, %c0_i32_0 : i32, i32, i32
  }
  func.func @transform_2(%arg0: i32) -> (i32, i32) {
    %c0_i32 = arith.constant 0 : i32
    %c0_i32_0 = arith.constant 0 : i32
    %c0_i32_1 = arith.constant 0 : i32
    return %c0_i32, %c0_i32_0 : i32, i32
  }
  func.func @transform_3(%arg0: i32) -> (i32, i32) {
    %c0_i32 = arith.constant 0 : i32
    %c0_i32_0 = arith.constant 0 : i32
    %c0_i32_1 = arith.constant 0 : i32
    return %c0_i32, %c0_i32_0 : i32, i32
  }
  func.func @transform_4(%arg0: i32) -> (i32, i32) {
    %c0_i32 = arith.constant 0 : i32
    %c0_i32_0 = arith.constant 0 : i32
    %c0_i32_1 = arith.constant 0 : i32
    return %c0_i32, %c0_i32_0 : i32, i32
  }
  func.func @transform_5(%arg0: i32) -> (i32, i32) {
    %c0_i32 = arith.constant 0 : i32
    %c0_i32_0 = arith.constant 0 : i32
    %c0_i32_1 = arith.constant 0 : i32
    return %c0_i32, %c0_i32_0 : i32, i32
  }
  func.func @transform_6(%arg0: i32) -> (i32, i32, i32) {
    %c0_i32 = arith.constant 0 : i32
    %c0_i32_0 = arith.constant 0 : i32
    %c0_i32_1 = arith.constant 0 : i32
    return %arg0, %c0_i32, %c0_i32_0 : i32, i32, i32
  }
}

</mosaic_0001>

<llo_original>
// kernel: topic_attn.1
$region0: #{topic_attn.1}
  #allocation0 [shape = 'u32[]', space=smem, size = 0x4, offset = 0x4, fixed_abs, tag = 'smem constant byte address 0x4 - core index']
  #allocation1 [shape = 'u32[144,128]{1,0:T(1,128)}', space=vmem, size = 0x12000, scoped, tag = 'internal scratch']
  %s0 = inlined_call_operand.vmem [shape: f32[2,8,32], index: 0, kind: input, shape index: {}]
  %s1 = inlined_call_operand.vmem [shape: f32[2,8,32], index: 1, kind: input, shape index: {}]
  %s2 = inlined_call_operand.vmem [shape: f32[32,32], index: 2, kind: input, shape index: {}]
  %s3 = inlined_call_operand.vmem [shape: f32[32,32], index: 3, kind: input, shape index: {}]
  %s4 = inlined_call_operand.vmem [shape: f32[32,32], index: 4, kind: input, shape index: {}]
  %s5 = inlined_call_operand.vmem [shape: f32[1,32], index: 5, kind: input, shape index: {}]
  %s6 = inlined_call_operand.hbm [shape: f32[2,8,32], index: 6, kind: output, shape index: {}]
  %s7 = sld [smem:[#allocation0]]
  $region34: #{topic_attn.1} parent=0
    _
  %s9 = ssub.s32 1, %s7
  %s10 = scalar_select 0, %s9, %s7
  $region1: #{topic_attn.1} parent=0
    #allocation2 [shape = 'u8[8192]{0}', space=vmem, size = 0x2000, scoped, tag = 'output window, operand 0, single buffered']
    #allocation3 [shape = 's32[1]{0}', space=sflag, size = 0x4, scoped, tag = 'scoped memory for topic_attn.1']
    %11 = vsyncpa [#allocation3], 0
    // Predicated region
    $region2: #{topic_attn.1} parent=1 // pred_check
      _
    $region3: #{topic_attn.1} parent=1 // pred_check_branch
      %13 = sbr.rel (0) target = $region5
    $region4: #{topic_attn.1} parent=1 // pred_region
      _
    $region5: #{topic_attn.1} parent=1 // pred_fallthru
      _
    // Predicated region
    $region6: #{topic_attn.1} parent=1 // pred_check
      _
    $region7: #{topic_attn.1} parent=1 // pred_check_branch
      %15 = sbr.rel (0) target = $region9
    $region8: #{topic_attn.1} parent=1 // pred_region
      _
    $region9: #{topic_attn.1} parent=1 // pred_fallthru
      _
    // Predicated region
    $region10: #{topic_attn.1} parent=1 // pred_check
      _
    $region11: #{topic_attn.1} parent=1 // pred_check_branch
      %17 = sbr.rel (0) target = $region13
    $region12: #{topic_attn.1} parent=1 // pred_region
      _
    $region13: #{topic_attn.1} parent=1 // pred_fallthru
      _
    // Predicated region
    $region14: #{topic_attn.1} parent=1 // pred_check
      _
    $region15: #{topic_attn.1} parent=1 // pred_check_branch
      %19 = sbr.rel (0) target = $region17
    $region16: #{topic_attn.1} parent=1 // pred_region
      _
    $region17: #{topic_attn.1} parent=1 // pred_fallthru
      _
    // Predicated region
    $region18: #{topic_attn.1} parent=1 // pred_check
      _
    $region19: #{topic_attn.1} parent=1 // pred_check_branch
      %21 = sbr.rel (0) target = $region21
    $region20: #{topic_attn.1} parent=1 // pred_region
      _
    $region21: #{topic_attn.1} parent=1 // pred_fallthru
      _
    // Predicated region
    $region22: #{topic_attn.1} parent=1 // pred_check
      _
    $region23: #{topic_attn.1} parent=1 // pred_check_branch
      %23 = sbr.rel (0) target = $region25
    $region24: #{topic_attn.1} parent=1 // pred_region
      _
    $region25: #{topic_attn.1} parent=1 // pred_fallthru
      _
    %v24 = vld [vmem:[%s0] sm:$0xff]
    %v25 = vld [vmem:[%s0 + $0x8] sm:$0xff]
    %v26 = vld [vmem:[%s1] sm:$0xff]
    %v27 = vld [vmem:[%s1 + $0x8] sm:$0xff]
    %v28 = vld [vmem:[%s2] sm:$0xff]
    %v29 = vld [vmem:[%s2 + $0x8] sm:$0xff]
    %v30 = vld [vmem:[%s2 + $0x10] sm:$0xff]
    %v31 = vld [vmem:[%s2 + $0x18] sm:$0xff]
    %vm32 = vcmask 261120
    %v34 = vsel %vm32, %v26, 0
    %v37 = vsel %vm32, %v27, 0
    %39 = vmatprep.subr.mxu0 0.0
    %40 = vmatpush1.msra.mxu0 %v28
    %41 = vmatprep.subr.mxu0 0.0
    %42 = vmatpush1.msra.mxu0 %v29
    %43 = vmatprep.subr.mxu0 0.0
    %44 = vmatpush1.msra.mxu0 %v30
    %45 = vmatprep.subr.mxu0 0.0
    %46 = vmatpush1.msra.mxu0 %v31
    %47 = vmatprep.subr.mxu0 0.0
    %48 = vmatpush1.msra.mxu0 0.0
    %49 = vmatprep.subr.mxu0 0.0
    %50 = vmatpush1.msra.mxu0 0.0
    %51 = vmatprep.subr.mxu0 0.0
    %52 = vmatpush1.msra.mxu0 0.0
    %53 = vmatprep.subr.mxu0 0.0
    %54 = vmatpush1.msra.mxu0 0.0
    %55 = vmatprep.subr.mxu0 0.0
    %56 = vmatpush1.msra.mxu0 0.0
    %57 = vmatprep.subr.mxu0 0.0
    %58 = vmatpush1.msra.mxu0 0.0
    %59 = vmatprep.subr.mxu0 0.0
    %60 = vmatpush1.msra.mxu0 0.0
    %61 = vmatprep.subr.mxu0 0.0
    %62 = vmatpush1.msra.mxu0 0.0
    %63 = vmatprep.subr.mxu0 0.0
    %64 = vmatpush1.msra.mxu0 0.0
    %65 = vmatprep.subr.mxu0 0.0
    %66 = vmatpush1.msra.mxu0 0.0
    %67 = vmatprep.subr.mxu0 0.0
    %68 = vmatpush1.msra.mxu0 0.0
    %69 = vmatprep.subr.mxu0 0.0
    %70 = vmatpush1.msra.mxu0 0.0
    %71 = vmatprep.subr.mxu0 0.0
    %72 = vmatpush1.msra.mxu0 0.0
    %73 = vmatprep.subr.mxu0 0.0
    %74 = vmatpush1.msra.mxu0 0.0
    %75 = vmatprep.subr.mxu0 0.0
    %76 = vmatpush1.msra.mxu0 0.0
    %77 = vmatprep.subr.mxu0 0.0
    %78 = vmatpush1.msra.mxu0 0.0
    %79 = vmatprep.subr.mxu0 0.0
    %80 = vmatpush1.msra.mxu0 0.0
    %81 = vmatprep.subr.mxu0 0.0
    %82 = vmatpush1.msra.mxu0 0.0
    %83 = vmatprep.subr.mxu0 0.0
    %84 = vmatpush1.msra.mxu0 0.0
    %85 = vmatprep.subr.mxu0 0.0
    %86 = vmatpush1.msra.mxu0 0.0
    %87 = vmatprep.subr.mxu0 0.0
    %88 = vmatpush1.msra.mxu0 0.0
    %89 = vmatprep.subr.mxu0 0.0
    %90 = vmatpush1.msra.mxu0 0.0
    %91 = vmatprep.subr.mxu0 0.0
    %92 = vmatpush1.msra.mxu0 0.0
    %93 = vmatprep.subr.mxu0 0.0
    %94 = vmatpush1.msra.mxu0 0.0
    %95 = vmatprep.subr.mxu0 0.0
    %96 = vmatpush1.msra.mxu0 0.0
    %97 = vmatprep.subr.mxu0 0.0
    %98 = vmatpush1.msra.mxu0 0.0
    %99 = vmatprep.subr.mxu0 0.0
    %100 = vmatpush1.msra.mxu0 0.0
    %101 = vmatprep.subr.mxu0 0.0
    %102 = vmatpush1.msra.mxu0 0.0
    %103 = vmatprep.mubr.f32.mxu0 0.0
    %104 = vmatmul.mubr.f32.gmra.mrb[0].mxu0 %v34
    %v105 = vpop.f32.mrb[0].mxu0
    %v106 = vadd.f32 0.0, %v105
    %v107 = vpop.f32.mrb[0].mxu0
    %108 = vmatprep.mubr.f32.mxu0 0.0
    %109 = vmatmul.mubr.f32.gmra.mrb[0].mxu0 %v37
    %v110 = vpop.f32.mrb[0].mxu0
    %v111 = vadd.f32 0.0, %v110
    %v112 = vpop.f32.mrb[0].mxu0
    %113 = vdwg.mxu0
    %v115 = vsel %vm32, %v24, 0
    %v118 = vsel %vm32, %v106, 0
    %120 = vmatprep.subr.mxu0 0.0
    %121 = vmatpush1.xpose.msra.mxu0 %v118
    %122 = vmatprep.subr.mxu0 0.0
    %123 = vmatpush1.xpose.msra.mxu0 0.0
    %124 = vmatprep.subr.mxu0 0.0
    %125 = vmatpush1.xpose.msra.mxu0 0.0
    %126 = vmatprep.subr.mxu0 0.0
    %127 = vmatpush1.xpose.msra.mxu0 0.0
    %128 = vmatprep.subr.mxu0 0.0
    %129 = vmatpush1.xpose.msra.mxu0 0.0
    %130 = vmatprep.subr.mxu0 0.0
    %131 = vmatpush1.xpose.msra.mxu0 0.0
    %132 = vmatprep.subr.mxu0 0.0
    %133 = vmatpush1.xpose.msra.mxu0 0.0
    %134 = vmatprep.subr.mxu0 0.0
    %135 = vmatpush1.xpose.msra.mxu0 0.0
    %136 = vmatprep.subr.mxu0 0.0
    %137 = vmatpush1.xpose.msra.mxu0 0.0
    %138 = vmatprep.subr.mxu0 0.0
    %139 = vmatpush1.xpose.msra.mxu0 0.0
    %140 = vmatprep.subr.mxu0 0.0
    %141 = vmatpush1.xpose.msra.mxu0 0.0
    %142 = vmatprep.subr.mxu0 0.0
    %143 = vmatpush1.xpose.msra.mxu0 0.0
    %144 = vmatprep.subr.mxu0 0.0
    %145 = vmatpush1.xpose.msra.mxu0 0.0
    %146 = vmatprep.subr.mxu0 0.0
    %147 = vmatpush1.xpose.msra.mxu0 0.0
    %148 = vmatprep.subr.mxu0 0.0
    %149 = vmatpush1.xpose.msra.mxu0 0.0
    %150 = vmatprep.subr.mxu0 0.0
    %151 = vmatpush1.xpose.msra.mxu0 0.0
    %152 = vmatprep.subr.mxu0 0.0
    %153 = vmatpush1.xpose.msra.mxu0 0.0
    %154 = vmatprep.subr.mxu0 0.0
    %155 = vmatpush1.xpose.msra.mxu0 0.0
    %156 = vmatprep.subr.mxu0 0.0
    %157 = vmatpush1.xpose.msra.mxu0 0.0
    %158 = vmatprep.subr.mxu0 0.0
    %159 = vmatpush1.xpose.msra.mxu0 0.0
    %160 = vmatprep.subr.mxu0 0.0
    %161 = vmatpush1.xpose.msra.mxu0 0.0
    %162 = vmatprep.subr.mxu0 0.0
    %163 = vmatpush1.xpose.msra.mxu0 0.0
    %164 = vmatprep.subr.mxu0 0.0
    %165 = vmatpush1.xpose.msra.mxu0 0.0
    %166 = vmatprep.subr.mxu0 0.0
    %167 = vmatpush1.xpose.msra.mxu0 0.0
    %168 = vmatprep.subr.mxu0 0.0
    %169 = vmatpush1.xpose.msra.mxu0 0.0
    %170 = vmatprep.subr.mxu0 0.0
    %171 = vmatpush1.xpose.msra.mxu0 0.0
    %172 = vmatprep.subr.mxu0 0.0
    %173 = vmatpush1.xpose.msra.mxu0 0.0
    %174 = vmatprep.subr.mxu0 0.0
    %175 = vmatpush1.xpose.msra.mxu0 0.0
    %176 = vmatprep.subr.mxu0 0.0
    %177 = vmatpush1.xpose.msra.mxu0 0.0
    %178 = vmatprep.subr.mxu0 0.0
    %179 = vmatpush1.xpose.msra.mxu0 0.0
    %180 = vmatprep.subr.mxu0 0.0
    %181 = vmatpush1.xpose.msra.mxu0 0.0
    %182 = vmatprep.subr.mxu0 0.0
    %183 = vmatpush1.xpose.msra.mxu0 0.0
    %184 = vmatprep.mubr.f32.mxu0 0.0
    %185 = vmatmul.mubr.f32.gmra.mrb[0].mxu0 %v115
    %v186 = vpop.f32.mrb[0].mxu0
    %v187 = vadd.f32 0.0, %v186
    %v188 = vpop.f32.mrb[0].mxu0
    %189 = vdwg.mxu0
    %v191 = vsel %vm32, %v25, 0
    %v194 = vsel %vm32, %v111, 0
    %196 = vmatprep.subr.mxu0 0.0
    %197 = vmatpush1.xpose.msra.mxu0 %v194
    %198 = vmatprep.subr.mxu0 0.0
    %199 = vmatpush1.xpose.msra.mxu0 0.0
    %200 = vmatprep.subr.mxu0 0.0
    %201 = vmatpush1.xpose.msra.mxu0 0.0
    %202 = vmatprep.subr.mxu0 0.0
    %203 = vmatpush1.xpose.msra.mxu0 0.0
    %204 = vmatprep.subr.mxu0 0.0
    %205 = vmatpush1.xpose.msra.mxu0 0.0
    %206 = vmatprep.subr.mxu0 0.0
    %207 = vmatpush1.xpose.msra.mxu0 0.0
    %208 = vmatprep.subr.mxu0 0.0
    %209 = vmatpush1.xpose.msra.mxu0 0.0
    %210 = vmatprep.subr.mxu0 0.0
    %211 = vmatpush1.xpose.msra.mxu0 0.0
    %212 = vmatprep.subr.mxu0 0.0
    %213 = vmatpush1.xpose.msra.mxu0 0.0
    %214 = vmatprep.subr.mxu0 0.0
    %215 = vmatpush1.xpose.msra.mxu0 0.0
    %216 = vmatprep.subr.mxu0 0.0
    %217 = vmatpush1.xpose.msra.mxu0 0.0
    %218 = vmatprep.subr.mxu0 0.0
    %219 = vmatpush1.xpose.msra.mxu0 0.0
    %220 = vmatprep.subr.mxu0 0.0
    %221 = vmatpush1.xpose.msra.mxu0 0.0
    %222 = vmatprep.subr.mxu0 0.0
    %223 = vmatpush1.xpose.msra.mxu0 0.0
    %224 = vmatprep.subr.mxu0 0.0
    %225 = vmatpush1.xpose.msra.mxu0 0.0
    %226 = vmatprep.subr.mxu0 0.0
    %227 = vmatpush1.xpose.msra.mxu0 0.0
    %228 = vmatprep.subr.mxu0 0.0
    %229 = vmatpush1.xpose.msra.mxu0 0.0
    %230 = vmatprep.subr.mxu0 0.0
    %231 = vmatpush1.xpose.msra.mxu0 0.0
    %232 = vmatprep.subr.mxu0 0.0
    %233 = vmatpush1.xpose.msra.mxu0 0.0
    %234 = vmatprep.subr.mxu0 0.0
    %235 = vmatpush1.xpose.msra.mxu0 0.0
    %236 = vmatprep.subr.mxu0 0.0
    %237 = vmatpush1.xpose.msra.mxu0 0.0
    %238 = vmatprep.subr.mxu0 0.0
    %239 = vmatpush1.xpose.msra.mxu0 0.0
    %240 = vmatprep.subr.mxu0 0.0
    %241 = vmatpush1.xpose.msra.mxu0 0.0
    %242 = vmatprep.subr.mxu0 0.0
    %243 = vmatpush1.xpose.msra.mxu0 0.0
    %244 = vmatprep.subr.mxu0 0.0
    %245 = vmatpush1.xpose.msra.mxu0 0.0
    %246 = vmatprep.subr.mxu0 0.0
    %247 = vmatpush1.xpose.msra.mxu0 0.0
    %248 = vmatprep.subr.mxu0 0.0
    %249 = vmatpush1.xpose.msra.mxu0 0.0
    %250 = vmatprep.subr.mxu0 0.0
    %251 = vmatpush1.xpose.msra.mxu0 0.0
    %252 = vmatprep.subr.mxu0 0.0
    %253 = vmatpush1.xpose.msra.mxu0 0.0
    %254 = vmatprep.subr.mxu0 0.0
    %255 = vmatpush1.xpose.msra.mxu0 0.0
    %256 = vmatprep.subr.mxu0 0.0
    %257 = vmatpush1.xpose.msra.mxu0 0.0
    %258 = vmatprep.subr.mxu0 0.0
    %259 = vmatpush1.xpose.msra.mxu0 0.0
    %260 = vmatprep.mubr.f32.mxu0 0.0
    %261 = vmatmul.mubr.f32.gmra.mrb[0].mxu0 %v191
    %v262 = vpop.f32.mrb[0].mxu0
    %v263 = vadd.f32 0.0, %v262
    %v264 = vpop.f32.mrb[0].mxu0
    %265 = vdwg.mxu0
    %vm266 = vcmask 64512
    %v267 = vsel %vm266, %v187, -inf
    %268 = vmax.xlane.f32.xlu0 %v267
    %v269 = vpop.xlane.xlu0 %268
    %v270 = vsel %vm266, %v263, -inf
    %271 = vmax.xlane.f32.xlu0 %v270
    %v272 = vpop.xlane.xlu0 %271
    %v273 = vsub.f32 %v187, %v269
    %v274 = vsub.f32 %v263, %v272
    %v275 = vmul.f32 %v273, 1.442695
    %v276 = vpow.pop %v275
    %v277 = vmul.f32 %v274, 1.442695
    %v278 = vpow.pop %v277
    %v279 = vsel %vm266, %v276, 0.0
    %280 = vadd.xlane.f32.xlu0 %v279
    %v281 = vpop.xlane.xlu0 %280
    %v282 = vsel %vm266, %v278, 0.0
    %283 = vadd.xlane.f32.xlu0 %v282
    %v284 = vpop.xlane.xlu0 %283
    %v285 = vrcp.pop %v281
    %v286 = vrcp.pop %v284
    %v287 = vmul.f32 %v276, %v285
    %v288 = vmul.f32 %v278, %v286
    %v290 = vsel %vm266, %v287, 0
    %292 = vmatprep.subr.mxu0 0.0
    %293 = vmatpush1.msra.mxu0 %v26
    %294 = vmatprep.subr.mxu0 0.0
    %295 = vmatpush1.msra.mxu0 0.0
    %296 = vmatprep.subr.mxu0 0.0
    %297 = vmatpush1.msra.mxu0 0.0
    %298 = vmatprep.subr.mxu0 0.0
    %299 = vmatpush1.msra.mxu0 0.0
    %300 = vmatprep.subr.mxu0 0.0
    %301 = vmatpush1.msra.mxu0 0.0
    %302 = vmatprep.subr.mxu0 0.0
    %303 = vmatpush1.msra.mxu0 0.0
    %304 = vmatprep.subr.mxu0 0.0
    %305 = vmatpush1.msra.mxu0 0.0
    %306 = vmatprep.subr.mxu0 0.0
    %307 = vmatpush1.msra.mxu0 0.0
    %308 = vmatprep.subr.mxu0 0.0
    %309 = vmatpush1.msra.mxu0 0.0
    %310 = vmatprep.subr.mxu0 0.0
    %311 = vmatpush1.msra.mxu0 0.0
    %312 = vmatprep.subr.mxu0 0.0
    %313 = vmatpush1.msra.mxu0 0.0
    %314 = vmatprep.subr.mxu0 0.0
    %315 = vmatpush1.msra.mxu0 0.0
    %316 = vmatprep.subr.mxu0 0.0
    %317 = vmatpush1.msra.mxu0 0.0
    %318 = vmatprep.subr.mxu0 0.0
    %319 = vmatpush1.msra.mxu0 0.0
    %320 = vmatprep.subr.mxu0 0.0
    %321 = vmatpush1.msra.mxu0 0.0
    %322 = vmatprep.subr.mxu0 0.0
    %323 = vmatpush1.msra.mxu0 0.0
    %324 = vmatprep.subr.mxu0 0.0
    %325 = vmatpush1.msra.mxu0 0.0
    %326 = vmatprep.subr.mxu0 0.0
    %327 = vmatpush1.msra.mxu0 0.0
    %328 = vmatprep.subr.mxu0 0.0
    %329 = vmatpush1.msra.mxu0 0.0
    %330 = vmatprep.subr.mxu0 0.0
    %331 = vmatpush1.msra.mxu0 0.0
    %332 = vmatprep.subr.mxu0 0.0
    %333 = vmatpush1.msra.mxu0 0.0
    %334 = vmatprep.subr.mxu0 0.0
    %335 = vmatpush1.msra.mxu0 0.0
    %336 = vmatprep.subr.mxu0 0.0
    %337 = vmatpush1.msra.mxu0 0.0
    %338 = vmatprep.subr.mxu0 0.0
    %339 = vmatpush1.msra.mxu0 0.0
    %340 = vmatprep.subr.mxu0 0.0
    %341 = vmatpush1.msra.mxu0 0.0
    %342 = vmatprep.subr.mxu0 0.0
    %343 = vmatpush1.msra.mxu0 0.0
    %344 = vmatprep.subr.mxu0 0.0
    %345 = vmatpush1.msra.mxu0 0.0
    %346 = vmatprep.subr.mxu0 0.0
    %347 = vmatpush1.msra.mxu0 0.0
    %348 = vmatprep.subr.mxu0 0.0
    %349 = vmatpush1.msra.mxu0 0.0
    %350 = vmatprep.subr.mxu0 0.0
    %351 = vmatpush1.msra.mxu0 0.0
    %352 = vmatprep.subr.mxu0 0.0
    %353 = vmatpush1.msra.mxu0 0.0
    %354 = vmatprep.subr.mxu0 0.0
    %355 = vmatpush1.msra.mxu0 0.0
    %356 = vmatprep.mubr.f32.mxu0 0.0
    %357 = vmatmul.mubr.f32.gmra.mrb[0].mxu0 %v290
    %v358 = vpop.f32.mrb[0].mxu0
    %v359 = vadd.f32 0.0, %v358
    %v360 = vpop.f32.mrb[0].mxu0
    %361 = vdwg.mxu0
    %v363 = vsel %vm266, %v288, 0
    %365 = vmatprep.subr.mxu0 0.0
    %366 = vmatpush1.msra.mxu0 %v27
    %367 = vmatprep.subr.mxu0 0.0
    %368 = vmatpush1.msra.mxu0 0.0
    %369 = vmatprep.subr.mxu0 0.0
    %370 = vmatpush1.msra.mxu0 0.0
    %371 = vmatprep.subr.mxu0 0.0
    %372 = vmatpush1.msra.mxu0 0.0
    %373 = vmatprep.subr.mxu0 0.0
    %374 = vmatpush1.msra.mxu0 0.0
    %375 = vmatprep.subr.mxu0 0.0
    %376 = vmatpush1.msra.mxu0 0.0
    %377 = vmatprep.subr.mxu0 0.0
    %378 = vmatpush1.msra.mxu0 0.0
    %379 = vmatprep.subr.mxu0 0.0
    %380 = vmatpush1.msra.mxu0 0.0
    %381 = vmatprep.subr.mxu0 0.0
    %382 = vmatpush1.msra.mxu0 0.0
    %383 = vmatprep.subr.mxu0 0.0
    %384 = vmatpush1.msra.mxu0 0.0
    %385 = vmatprep.subr.mxu0 0.0
    %386 = vmatpush1.msra.mxu0 0.0
    %387 = vmatprep.subr.mxu0 0.0
    %388 = vmatpush1.msra.mxu0 0.0
    %389 = vmatprep.subr.mxu0 0.0
    %390 = vmatpush1.msra.mxu0 0.0
    %391 = vmatprep.subr.mxu0 0.0
    %392 = vmatpush1.msra.mxu0 0.0
    %393 = vmatprep.subr.mxu0 0.0
    %394 = vmatpush1.msra.mxu0 0.0
    %395 = vmatprep.subr.mxu0 0.0
    %396 = vmatpush1.msra.mxu0 0.0
    %397 = vmatprep.subr.mxu0 0.0
    %398 = vmatpush1.msra.mxu0 0.0
    %399 = vmatprep.subr.mxu0 0.0
    %400 = vmatpush1.msra.mxu0 0.0
    %401 = vmatprep.subr.mxu0 0.0
    %402 = vmatpush1.msra.mxu0 0.0
    %403 = vmatprep.subr.mxu0 0.0
    %404 = vmatpush1.msra.mxu0 0.0
    %405 = vmatprep.subr.mxu0 0.0
    %406 = vmatpush1.msra.mxu0 0.0
    %407 = vmatprep.subr.mxu0 0.0
    %408 = vmatpush1.msra.mxu0 0.0
    %409 = vmatprep.subr.mxu0 0.0
    %410 = vmatpush1.msra.mxu0 0.0
    %411 = vmatprep.subr.mxu0 0.0
    %412 = vmatpush1.msra.mxu0 0.0
    %413 = vmatprep.subr.mxu0 0.0
    %414 = vmatpush1.msra.mxu0 0.0
    %415 = vmatprep.subr.mxu0 0.0
    %416 = vmatpush1.msra.mxu0 0.0
    %417 = vmatprep.subr.mxu0 0.0
    %418 = vmatpush1.msra.mxu0 0.0
    %419 = vmatprep.subr.mxu0 0.0
    %420 = vmatpush1.msra.mxu0 0.0
    %421 = vmatprep.subr.mxu0 0.0
    %422 = vmatpush1.msra.mxu0 0.0
    %423 = vmatprep.subr.mxu0 0.0
    %424 = vmatpush1.msra.mxu0 0.0
    %425 = vmatprep.subr.mxu0 0.0
    %426 = vmatpush1.msra.mxu0 0.0
    %427 = vmatprep.subr.mxu0 0.0
    %428 = vmatpush1.msra.mxu0 0.0
    %429 = vmatprep.mubr.f32.mxu0 0.0
    %430 = vmatmul.mubr.f32.gmra.mrb[0].mxu0 %v363
    %v431 = vpop.f32.mrb[0].mxu0
    %v432 = vadd.f32 0.0, %v431
    %v433 = vpop.f32.mrb[0].mxu0
    %434 = vdwg.mxu0
    %v435 = vld [vmem:[%s3] sm:$0xff]
    %v436 = vld [vmem:[%s3 + $0x8] sm:$0xff]
    %v437 = vld [vmem:[%s3 + $0x10] sm:$0xff]
    %v438 = vld [vmem:[%s3 + $0x18] sm:$0xff]
    %v439 = vld [vmem:[%s4] sm:$0xff]
    %v440 = vld [vmem:[%s4 + $0x8] sm:$0xff]
    %v441 = vld [vmem:[%s4 + $0x10] sm:$0xff]
    %v442 = vld [vmem:[%s4 + $0x18] sm:$0xff]
    %443 = vmatprep.subr.mxu0 0.0
    %444 = vmatpush1.msra.mxu0 %v439
    %445 = vmatprep.subr.mxu0 0.0
    %446 = vmatpush1.msra.mxu0 %v440
    %447 = vmatprep.subr.mxu0 0.0
    %448 = vmatpush1.msra.mxu0 %v441
    %449 = vmatprep.subr.mxu0 0.0
    %450 = vmatpush1.msra.mxu0 %v442
    %451 = vmatprep.subr.mxu0 0.0
    %452 = vmatpush1.msra.mxu0 0.0
    %453 = vmatprep.subr.mxu0 0.0
    %454 = vmatpush1.msra.mxu0 0.0
    %455 = vmatprep.subr.mxu0 0.0
    %456 = vmatpush1.msra.mxu0 0.0
    %457 = vmatprep.subr.mxu0 0.0
    %458 = vmatpush1.msra.mxu0 0.0
    %459 = vmatprep.subr.mxu0 0.0
    %460 = vmatpush1.msra.mxu0 0.0
    %461 = vmatprep.subr.mxu0 0.0
    %462 = vmatpush1.msra.mxu0 0.0
    %463 = vmatprep.subr.mxu0 0.0
    %464 = vmatpush1.msra.mxu0 0.0
    %465 = vmatprep.subr.mxu0 0.0
    %466 = vmatpush1.msra.mxu0 0.0
    %467 = vmatprep.subr.mxu0 0.0
    %468 = vmatpush1.msra.mxu0 0.0
    %469 = vmatprep.subr.mxu0 0.0
    %470 = vmatpush1.msra.mxu0 0.0
    %471 = vmatprep.subr.mxu0 0.0
    %472 = vmatpush1.msra.mxu0 0.0
    %473 = vmatprep.subr.mxu0 0.0
    %474 = vmatpush1.msra.mxu0 0.0
    %475 = vmatprep.subr.mxu0 0.0
    %476 = vmatpush1.msra.mxu0 0.0
    %477 = vmatprep.subr.mxu0 0.0
    %478 = vmatpush1.msra.mxu0 0.0
    %479 = vmatprep.subr.mxu0 0.0
    %480 = vmatpush1.msra.mxu0 0.0
    %481 = vmatprep.subr.mxu0 0.0
    %482 = vmatpush1.msra.mxu0 0.0
    %483 = vmatprep.subr.mxu0 0.0
    %484 = vmatpush1.msra.mxu0 0.0
    %485 = vmatprep.subr.mxu0 0.0
    %486 = vmatpush1.msra.mxu0 0.0
    %487 = vmatprep.subr.mxu0 0.0
    %488 = vmatpush1.msra.mxu0 0.0
    %489 = vmatprep.subr.mxu0 0.0
    %490 = vmatpush1.msra.mxu0 0.0
    %491 = vmatprep.subr.mxu0 0.0
    %492 = vmatpush1.msra.mxu0 0.0
    %493 = vmatprep.subr.mxu0 0.0
    %494 = vmatpush1.msra.mxu0 0.0
    %495 = vmatprep.subr.mxu0 0.0
    %496 = vmatpush1.msra.mxu0 0.0
    %497 = vmatprep.subr.mxu0 0.0
    %498 = vmatpush1.msra.mxu0 0.0
    %499 = vmatprep.subr.mxu0 0.0
    %500 = vmatpush1.msra.mxu0 0.0
    %501 = vmatprep.subr.mxu0 0.0
    %502 = vmatpush1.msra.mxu0 0.0
    %503 = vmatprep.subr.mxu0 0.0
    %504 = vmatpush1.msra.mxu0 0.0
    %505 = vmatprep.subr.mxu0 0.0
    %506 = vmatpush1.msra.mxu0 0.0
    %507 = vmatprep.mubr.f32.mxu0 0.0
    %508 = vmatmul.mubr.f32.gmra.mrb[0].mxu0 %v115
    %v509 = vpop.f32.mrb[0].mxu0
    %v510 = vadd.f32 0.0, %v509
    %v511 = vpop.f32.mrb[0].mxu0
    %512 = vmatprep.mubr.f32.mxu0 0.0
    %513 = vmatmul.mubr.f32.gmra.mrb[0].mxu0 %v191
    %v514 = vpop.f32.mrb[0].mxu0
    %v515 = vadd.f32 0.0, %v514
    %v516 = vpop.f32.mrb[0].mxu0
    %517 = vdwg.mxu0
    %v519 = vsel %vm32, %v359, 0
    %v522 = vsel %vm32, %v432, 0
    %524 = vmatprep.subr.mxu0 0.0
    %525 = vmatpush1.msra.mxu0 %v435
    %526 = vmatprep.subr.mxu0 0.0
    %527 = vmatpush1.msra.mxu0 %v436
    %528 = vmatprep.subr.mxu0 0.0
    %529 = vmatpush1.msra.mxu0 %v437
    %530 = vmatprep.subr.mxu0 0.0
    %531 = vmatpush1.msra.mxu0 %v438
    %532 = vmatprep.subr.mxu0 0.0
    %533 = vmatpush1.msra.mxu0 0.0
    %534 = vmatprep.subr.mxu0 0.0
    %535 = vmatpush1.msra.mxu0 0.0
    %536 = vmatprep.subr.mxu0 0.0
    %537 = vmatpush1.msra.mxu0 0.0
    %538 = vmatprep.subr.mxu0 0.0
    %539 = vmatpush1.msra.mxu0 0.0
    %540 = vmatprep.subr.mxu0 0.0
    %541 = vmatpush1.msra.mxu0 0.0
    %542 = vmatprep.subr.mxu0 0.0
    %543 = vmatpush1.msra.mxu0 0.0
    %544 = vmatprep.subr.mxu0 0.0
    %545 = vmatpush1.msra.mxu0 0.0
    %546 = vmatprep.subr.mxu0 0.0
    %547 = vmatpush1.msra.mxu0 0.0
    %548 = vmatprep.subr.mxu0 0.0
    %549 = vmatpush1.msra.mxu0 0.0
    %550 = vmatprep.subr.mxu0 0.0
    %551 = vmatpush1.msra.mxu0 0.0
    %552 = vmatprep.subr.mxu0 0.0
    %553 = vmatpush1.msra.mxu0 0.0
    %554 = vmatprep.subr.mxu0 0.0
    %555 = vmatpush1.msra.mxu0 0.0
    %556 = vmatprep.subr.mxu0 0.0
    %557 = vmatpush1.msra.mxu0 0.0
    %558 = vmatprep.subr.mxu0 0.0
    %559 = vmatpush1.msra.mxu0 0.0
    %560 = vmatprep.subr.mxu0 0.0
    %561 = vmatpush1.msra.mxu0 0.0
    %562 = vmatprep.subr.mxu0 0.0
    %563 = vmatpush1.msra.mxu0 0.0
    %564 = vmatprep.subr.mxu0 0.0
    %565 = vmatpush1.msra.mxu0 0.0
    %566 = vmatprep.subr.mxu0 0.0
    %567 = vmatpush1.msra.mxu0 0.0
    %568 = vmatprep.subr.mxu0 0.0
    %569 = vmatpush1.msra.mxu0 0.0
    %570 = vmatprep.subr.mxu0 0.0
    %571 = vmatpush1.msra.mxu0 0.0
    %572 = vmatprep.subr.mxu0 0.0
    %573 = vmatpush1.msra.mxu0 0.0
    %574 = vmatprep.subr.mxu0 0.0
    %575 = vmatpush1.msra.mxu0 0.0
    %576 = vmatprep.subr.mxu0 0.0
    %577 = vmatpush1.msra.mxu0 0.0
    %578 = vmatprep.subr.mxu0 0.0
    %579 = vmatpush1.msra.mxu0 0.0
    %580 = vmatprep.subr.mxu0 0.0
    %581 = vmatpush1.msra.mxu0 0.0
    %582 = vmatprep.subr.mxu0 0.0
    %583 = vmatpush1.msra.mxu0 0.0
    %584 = vmatprep.subr.mxu0 0.0
    %585 = vmatpush1.msra.mxu0 0.0
    %586 = vmatprep.subr.mxu0 0.0
    %587 = vmatpush1.msra.mxu0 0.0
    %588 = vmatprep.mubr.f32.mxu0 0.0
    %589 = vmatmul.mubr.f32.gmra.mrb[0].mxu0 %v519
    %v590 = vpop.f32.mrb[0].mxu0
    %v591 = vadd.f32 %v510, %v590
    %v592 = vpop.f32.mrb[0].mxu0
    %593 = vmatprep.mubr.f32.mxu0 0.0
    %594 = vmatmul.mubr.f32.gmra.mrb[0].mxu0 %v522
    %v595 = vpop.f32.mrb[0].mxu0
    %v596 = vadd.f32 %v515, %v595
    %v597 = vpop.f32.mrb[0].mxu0
    %598 = vdwg.mxu0
    %v599 = vld [vmem:[%s5] sm:$0x1]
    %v601 = vlaneseq
    %v602 = vshrl.u32 %v601, 7
    %v603 = vsub.s32 0, %v602
    %v604 = vrot.slane %v599, %v603
    %v606 = vadd.f32 %v591, %v604
    %v607 = vadd.f32 %v596, %v604
    %v608 = vtanh.pop %v606
    %v609 = vtanh.pop %v607
    %610 = vst.msk [vmem:[#allocation2] sm:$0xff] %vm32, %v608
    %611 = vst.msk [vmem:[#allocation2 + $0x8] sm:$0xff] %vm32, %v609
    // Predicated region
    $region26: #{topic_attn.1} parent=1 // pred_check
      _
    $region27: #{topic_attn.1} parent=1 // pred_check_branch
      %613 = sbr.rel (0) target = $region29
    $region28: #{topic_attn.1} parent=1 // pred_region
      %s615 = ssub.s32 256, 256
      %616 = vsyncadd [#allocation3], %s615
      %s617 = sshll.u32 [#allocation2], 4
      %s618 = int_to_ptr.vmem [resolvable:$true] %s617
      %623 = dma.vmem_to_hbm [thread:$0]  %s618, 256, %s6, [#allocation3], 128, 128, 8
    $region29: #{topic_attn.1} parent=1 // pred_fallthru
      _
    // Predicated region
    $region30: #{topic_attn.1} parent=1 // pred_check
      _
    $region31: #{topic_attn.1} parent=1 // pred_check_branch
      %625 = sbr.rel (0) target = $region33
    $region32: #{topic_attn.1} parent=1 // pred_region
      %626 = dma.done [#allocation3], 256
    $region33: #{topic_attn.1} parent=1 // pred_fallthru
      _
    %627 = vsyncpa [#allocation3], 1

</llo_original>
